<compile_context>
chip_gen: v7x
topology: tpu7x:2x2x1
jax: 0.10.0
libtpu: 0.0.40
codegen_flags: <defaults>
</compile_context>

<pallas_src>
import functools
import math

import jax
import jax.numpy as jnp
from jax.experimental import pallas as pl
from jax.experimental.pallas import tpu as pltpu

# ------------------------------------------------------------------ config
CONFIG = {
    "hidden_size": 32,     # d_model (must be even)
    "max_seq_len": 64,     # keep cache small for the demo
    "rope_base": 10000,
}


# ------------------------------------------------------------------ cache (plain JAX glue)
def rope_frequency_cache(d_model: int, max_seq_len: int, base: int):
    d = d_model // 2
    indices_j = jnp.arange(0, d, dtype=jnp.float32)
    theta = 1.0 / (base ** (2.0 * indices_j / d_model))
    position_indices_m = jnp.arange(max_seq_len, dtype=jnp.float32)
    angles = position_indices_m[:, None] * theta[None, :]        # (max_seq_len, d)
    return jnp.cos(angles), jnp.sin(angles)


# ------------------------------------------------------------------ Pallas kernel
def _rope_kernel(x_ref, tab_ref, o_ref):
    """x_ref: (tile_m, L) interleaved features (native dtype).
    tab_ref: (3, L) f32 = [cos | sin_signed*even_mask | sin_signed*odd_mask].

      even lane l: out = x[l]*cos - x[l+1]*sin   (sign folded into row 1)
      odd  lane l: out = x[l]*cos + x[l-1]*sin   (row 2)

    Wrap-around lanes from the rolls land on lanes whose masked sin is 0.
    """
    x = x_ref[...]                                 # native dtype (bf16 stays bf16)
    c = tab_ref[0:1, :]                            # (1, L) f32, broadcasts over rows
    s_even = tab_ref[1:2, :]                       # nonzero only on even lanes
    s_odd = tab_ref[2:3, :]                        # nonzero only on odd lanes
    nl = x.shape[1]

    up = pltpu.roll(x, nl - 1, 1)                  # lane l <- x[l+1]  (partner for even lanes)
    dn = pltpu.roll(x, 1, 1)                       # lane l <- x[l-1]  (partner for odd lanes)
    # f32 tables promote the products to f32; accumulate in f32, store native.
    out = x * c + up * s_even + dn * s_odd
    o_ref[...] = out.astype(o_ref.dtype)


# ------------------------------------------------------------------ tiling heuristics
def _choose_lane_w(total: int, dm: int) -> int:
    """Smallest multiple of d_model that is also a multiple of 128 and divides
    the total element count (lane-dense view -> unmasked 128-lane stores)."""
    g = math.gcd(dm, 128)
    lane_w = dm * (128 // g)                       # lcm(d_model, 128)
    if total % lane_w == 0:
        return lane_w
    return dm                                      # fallback: masked stores (correct, slower)


def _choose_tile_m(m: int, lane_w: int, dtype) -> int:
    """~4 MiB of activations per block, multiple of the dtype's sublane packing.
    When the whole problem fits in one block, split into >=2 grid steps so the
    'parallel' grid axis can shard across v7x's two TensorCores."""
    itemsize = jnp.dtype(dtype).itemsize
    sub = 8 * max(1, 4 // itemsize)                # 8 (f32), 16 (bf16), 32 (int8/fp8)
    budget = 4 << 20                               # 4 buffers (x+out dbl-buffered) ~= 16 MiB
    t = (budget // (lane_w * itemsize) // sub) * sub
    t = max(sub, t)
    if t >= m:
        if m >= 2 * sub:
            # ~half the rows, rounded up to the sublane packing (still < m).
            t = ((((m + 1) // 2) + sub - 1) // sub) * sub
        else:
            t = m                                  # single block equals full extent
    return t


# ------------------------------------------------------------------ fused apply (one dispatch)
@functools.partial(jax.jit, static_argnames=("tile_m", "lane_w"))
def _rope_apply(x, tables, pos, *, tile_m, lane_w):
    """x: (..., d_model) activations; tables: (S, 3, d_model) f32; pos: i32 scalar."""
    orig_shape = x.shape
    dm = tables.shape[-1]
    reps = lane_w // dm

    row = jax.lax.dynamic_index_in_dim(tables, pos, axis=0, keepdims=False)   # (3, dm)
    tab = jnp.tile(row, (1, reps))                                            # (3, lane_w) f32

    m = x.size // lane_w
    x2 = x.reshape(m, lane_w)                      # contiguous view, no HBM pass

    itemsize = jnp.dtype(x.dtype).itemsize
    cost = pl.CostEstimate(
        flops=6 * m * lane_w,
        transcendentals=0,
        bytes_accessed=2 * m * lane_w * itemsize + 3 * lane_w * 4,
    )
    out2 = pl.pallas_call(
        _rope_kernel,
        out_shape=jax.ShapeDtypeStruct((m, lane_w), x.dtype),
        grid_spec=pltpu.PrefetchScalarGridSpec(
            num_scalar_prefetch=0,
            grid=(pl.cdiv(m, tile_m),),
            in_specs=[
                pl.BlockSpec((tile_m, lane_w), lambda i: (i, 0)),
                pl.BlockSpec((3, lane_w), lambda i: (0, 0)),
            ],
            out_specs=pl.BlockSpec((tile_m, lane_w), lambda i: (i, 0)),
        ),
        compiler_params=pltpu.CompilerParams(
            dimension_semantics=("parallel",),
            vmem_limit_bytes=48 * 1024 * 1024,     # fits v7x's 64 MiB; needed on v5e (16 MiB default)
        ),
        cost_estimate=cost,
    )(x2, tab)
    return out2.reshape(orig_shape)


# ------------------------------------------------------------------ module-like wrapper
class RoPE:
    def __init__(self, d_model=CONFIG["hidden_size"],
                 max_seq_len=CONFIG.get("max_seq_len", 2048),
                 base=CONFIG.get("rope_base", 10000)):
        if d_model % 2 != 0:
            raise ValueError(f"Embedding dimension {d_model} must be even for RoPE.")
        self.d_model = d_model
        self.max_seq_len = max_seq_len
        self.base = base
        self.d = d_model // 2
        self.cos_cached, self.sin_cached = rope_frequency_cache(
            d_model, max_seq_len, base)

        # Kernel-side fused table, built once: (max_seq_len, 3, d_model) f32
        #   row 0: cos repeated per pair
        #   row 1: sin with the (-1,+1,...) sign folded in, masked to even lanes
        #   row 2: same signed sin, masked to odd lanes
        lane = jnp.arange(d_model)
        is_even = (lane % 2) == 0
        sign = jnp.where(is_even, -1.0, 1.0).astype(jnp.float32)
        cos_i = jnp.repeat(self.cos_cached, 2, axis=-1)                       # (S, dm)
        sin_signed = jnp.repeat(self.sin_cached, 2, axis=-1) * sign[None, :]  # (S, dm)
        self.tables = jnp.stack(
            [cos_i,
             sin_signed * is_even.astype(jnp.float32)[None, :],
             sin_signed * (~is_even).astype(jnp.float32)[None, :]],
            axis=1).astype(jnp.float32)                                       # (S, 3, dm)

    def __call__(self, x: jnp.ndarray, position_index: int) -> jnp.ndarray:
        if not 0 <= position_index < self.max_seq_len:
            raise ValueError(
                f"Position index {position_index} is out of bounds "
                f"for max_seq_len {self.max_seq_len}")
        assert x.shape[-1] == self.d_model

        total = math.prod(x.shape)
        lane_w = _choose_lane_w(total, self.d_model)
        tile_m = _choose_tile_m(total // lane_w, lane_w, x.dtype)
        return _rope_apply(
            x, self.tables, jnp.asarray(position_index, jnp.int32),
            tile_m=tile_m, lane_w=lane_w)


# ------------------------------------------------------------------ reference (plain jnp)
def rope_reference(x, cos_row, sin_row):
    x_even = x[..., 0::2]
    x_odd = x[..., 1::2]
    r_even = x_even * cos_row - x_odd * sin_row
    r_odd = x_even * sin_row + x_odd * cos_row
    return jnp.stack([r_even, r_odd], axis=-1).reshape(x.shape)


if __name__ == "__main__":
    key = jax.random.PRNGKey(0)
    position_index = 5

    # ---- primary case: batch=2, seq=8, hidden=32, f32 (folded lane_w=128 path)
    batch, seq, hidden = 2, 8, CONFIG["hidden_size"]
    x = jax.random.normal(key, (batch, seq, hidden), dtype=jnp.float32)
    rope = RoPE(d_model=hidden, max_seq_len=CONFIG["max_seq_len"],
                base=CONFIG["rope_base"])
    out = jax.block_until_ready(rope(x, position_index))
    ref = rope_reference(x, rope.cos_cached[position_index],
                         rope.sin_cached[position_index])
    assert out.shape == x.shape and out.dtype == x.dtype
    assert jnp.allclose(out, ref, atol=1e-5, rtol=1e-5), "f32 dm=32 mismatch"

    # ---- wide-head case: d_model=256 (lane_w = d_model, multi-vreg lane roll)
    rope256 = RoPE(d_model=256, max_seq_len=CONFIG["max_seq_len"],
                   base=CONFIG["rope_base"])
    x256 = jax.random.normal(jax.random.PRNGKey(1), (2, 4, 256), dtype=jnp.float32)
    out256 = jax.block_until_ready(rope256(x256, position_index))
    ref256 = rope_reference(x256, rope256.cos_cached[position_index],
                            rope256.sin_cached[position_index])
    assert jnp.allclose(out256, ref256, atol=1e-5, rtol=1e-5), "f32 dm=256 mismatch"

    # ---- bf16 case: native-dtype pair swap, f32 accumulation
    xb = jax.random.normal(jax.random.PRNGKey(2), (2, 8, hidden),
                           dtype=jnp.float32).astype(jnp.bfloat16)
    outb = jax.block_until_ready(rope(xb, position_index))
    refb = rope_reference(xb.astype(jnp.float32),
                          rope.cos_cached[position_index],
                          rope.sin_cached[position_index])
    assert outb.dtype == jnp.bfloat16
    assert jnp.allclose(outb.astype(jnp.float32), refb, atol=5e-2, rtol=5e-2), \
        "bf16 dm=32 mismatch"

    print("KERNEL_OK")
</pallas_src>

<mosaic_0001>
module attributes {stable_mosaic.version = 11 : i64} {
  func.func @_rope_kernel(%arg0: i32, %arg1: memref<4x128xf32, #tpu.memory_space<vmem>>, %arg2: memref<3x128xf32, #tpu.memory_space<vmem>>, %arg3: memref<4x128xf32, #tpu.memory_space<vmem>>) attributes {dimension_semantics = [#tpu.dimension_semantics<parallel>], iteration_bounds = array<i64: 1>, scalar_prefetch = 0 : i64, scratch_operands = 0 : i64, tpu.core_type = #tpu.core_type<tc>, window_params = [{transform_indices = @transform_0, window_bounds = array<i64: 4, 128>}, {pipeline_mode = #tpu.pipeline_mode<synchronous>, transform_indices = @transform_1, window_bounds = array<i64: 3, 128>}, {transform_indices = @transform_2, window_bounds = array<i64: 4, 128>}]} {
    %c0 = arith.constant 0 : index
    %c0_0 = arith.constant 0 : index
    %0 = vector.load %arg1[%c0, %c0_0] : memref<4x128xf32, #tpu.memory_space<vmem>>, vector<4x128xf32>
    %c0_1 = arith.constant 0 : index
    %c0_2 = arith.constant 0 : index
    %1 = vector.load %arg2[%c0_1, %c0_2] : memref<3x128xf32, #tpu.memory_space<vmem>>, vector<1x128xf32>
    %c1 = arith.constant 1 : index
    %c0_3 = arith.constant 0 : index
    %2 = vector.load %arg2[%c1, %c0_3] : memref<3x128xf32, #tpu.memory_space<vmem>>, vector<1x128xf32>
    %c2 = arith.constant 2 : index
    %c0_4 = arith.constant 0 : index
    %3 = vector.load %arg2[%c2, %c0_4] : memref<3x128xf32, #tpu.memory_space<vmem>>, vector<1x128xf32>
    %c127_i32 = arith.constant 127 : i32
    %4 = tpu.dynamic_rotate %0 by %c127_i32 dim 1 : vector<4x128xf32>, i32 -> vector<4x128xf32>
    %c1_i32 = arith.constant 1 : i32
    %5 = tpu.dynamic_rotate %0 by %c1_i32 dim 1 : vector<4x128xf32>, i32 -> vector<4x128xf32>
    %6 = vector.broadcast %1 : vector<1x128xf32> to vector<4x128xf32>
    %7 = arith.mulf %0, %6 : vector<4x128xf32>
    %8 = vector.broadcast %2 : vector<1x128xf32> to vector<4x128xf32>
    %9 = arith.mulf %4, %8 : vector<4x128xf32>
    %10 = arith.addf %7, %9 : vector<4x128xf32>
    %11 = vector.broadcast %3 : vector<1x128xf32> to vector<4x128xf32>
    %12 = arith.mulf %5, %11 : vector<4x128xf32>
    %13 = arith.addf %10, %12 : vector<4x128xf32>
    %c0_5 = arith.constant 0 : index
    %c0_6 = arith.constant 0 : index
    %14 = vector.load %arg3[%c0_5, %c0_6] : memref<4x128xf32, #tpu.memory_space<vmem>>, vector<4x128xf32>
    tpu.vector_store %arg3[%c0_5, %c0_6], %13 {strides = array<i32>} : memref<4x128xf32, #tpu.memory_space<vmem>>, vector<4x128xf32>,
    return
  }
  func.func @transform_0(%arg0: i32) -> (i32, i32) {
    %c0_i32 = arith.constant 0 : i32
    %c0_i32_0 = arith.constant 0 : i32
    return %arg0, %c0_i32 : i32, i32
  }
  func.func @transform_1(%arg0: i32) -> (i32, i32) {
    %c0_i32 = arith.constant 0 : i32
    %c0_i32_0 = arith.constant 0 : i32
    %c0_i32_1 = arith.constant 0 : i32
    return %c0_i32, %c0_i32_0 : i32, i32
  }
  func.func @transform_2(%arg0: i32) -> (i32, i32) {
    %c0_i32 = arith.constant 0 : i32
    %c0_i32_0 = arith.constant 0 : i32
    return %arg0, %c0_i32 : i32, i32
  }
}

</mosaic_0001>

<llo_original>
// kernel: tile.7
$region0: #{tile.7}
  %s0 = inlined_call_operand.vmem [shape: f32[3,4,32], index: 0, kind: input, shape index: {}]
  %s1 = inlined_call_operand.vmem [shape: f32[3,128], index: 1, kind: output, shape index: {}]
  $region1: #{tile.7} parent=0
    #allocation0 [shape = 'u8[4096]{0}', space=vmem, size = 0x1000, scoped, tag = 'scoped mem for output reshape']
    #allocation1 [shape = 'u8[12288]{0}', space=vmem, size = 0x3000, scoped, tag = 'scoped mem for input reshape']
    %s3 = sshllo.u32 0, 4
    %s4 = smul.addr 4, 2
    %s5 = scalar_lea.vmem %s0, %s4
    %v6 = vld [vmem:[%s5] sm:%s3]
    %s7 = scalar_lea.vmem [#allocation1], 16
    %8 = vst [vmem:[%s7] sm:%s3] %v6
    %s9 = scalar_lea.vmem %s0, 4
    %v10 = vld [vmem:[%s9] sm:%s3]
    %s11 = scalar_lea.vmem [#allocation1], 8
    %12 = vst [vmem:[%s11] sm:%s3] %v10
    %v13 = vld [vmem:[%s0] sm:%s3]
    %14 = vst [vmem:[#allocation1] sm:%s3] %v13
    %v15 = vld [vmem:[#allocation1] ss:$8 sm:$0x7]
    %vm16 = vcmask 261120
    %17 = vst.msk [vmem:[#allocation0] sm:$0x7] %vm16, %v15
    %s18 = scalar_lea.vmem [#allocation1], 3
    %v19 = vld [vmem:[%s18] ss:$8 sm:$0x7]
    %20 = vrot.lane.b32.xlu0 %v19, 96
    %v21 = vpop.permute.xlu0 %20
    %vm22 = vcmask 1048320
    %23 = vst.msk [vmem:[#allocation0] sm:$0x7] %vm22, %v21
    %s24 = scalar_lea.vmem [#allocation1], 2
    %v25 = vld [vmem:[%s24] ss:$8 sm:$0x7]
    %26 = vrot.lane.b32.xlu0 %v25, 64
    %v27 = vpop.permute.xlu0 %26
    %vm28 = vcmask 785920
    %29 = vst.msk [vmem:[#allocation0] sm:$0x7] %vm28, %v27
    %s30 = scalar_lea.vmem [#allocation1], 1
    %v31 = vld [vmem:[%s30] ss:$8 sm:$0x7]
    %32 = vrot.lane.b32.xlu0 %v31, 32
    %v33 = vpop.permute.xlu0 %32
    %vm34 = vcmask 523520
    %35 = vst.msk [vmem:[#allocation0] sm:$0x7] %vm34, %v33
    %s37 = sshllo.u32 0, 4
    %v39 = vld [vmem:[#allocation0] sm:%s37]
    %s40 = sshllo.u32 0, 4
    %41 = vst [vmem:[%s1] sm:%s40] %v39

// kernel: _rope_apply.1
$region0: #{_rope_apply.1}
  #allocation0 [shape = 'u32[]', space=smem, size = 0x4, offset = 0x4, fixed_abs, tag = 'smem constant byte address 0x4 - core index']
  #allocation1 [shape = 'u32[144,128]{1,0:T(1,128)}', space=vmem, size = 0x12000, scoped, tag = 'internal scratch']
  %s0 = inlined_call_operand.vmem [shape: f32[4,128], index: 0, kind: input, shape index: {}]
  %s1 = inlined_call_operand.vmem [shape: f32[3,128], index: 1, kind: input, shape index: {}]
  %s2 = inlined_call_operand.vmem [shape: f32[4,128], index: 2, kind: output, shape index: {}]
  %s3 = sld [smem:[#allocation0]]
  $region18: #{_rope_apply.1} parent=0
    _
  %s5 = ssub.s32 1, %s3
  %s6 = scalar_select 0, %s5, %s3
  // Predicated region
  $region2: #{_rope_apply.1} parent=0 // pred_check
    _
  $region3: #{_rope_apply.1} parent=0 // pred_check_branch
    %8 = sbr.rel (0) target = $region5
  $region4: #{_rope_apply.1} parent=0 // pred_region
    _
  $region5: #{_rope_apply.1} parent=0 // pred_fallthru
    _
  // Predicated region
  $region6: #{_rope_apply.1} parent=0 // pred_check
    _
  $region7: #{_rope_apply.1} parent=0 // pred_check_branch
    %10 = sbr.rel (0) target = $region9
  $region8: #{_rope_apply.1} parent=0 // pred_region
    _
  $region9: #{_rope_apply.1} parent=0 // pred_fallthru
    _
  %v11 = vld [vmem:[%s0] sm:$0xf]
  %v12 = vld [vmem:[%s1] sm:$0x1]
  %v13 = vld [vmem:[%s1 + $0x1] sm:$0x1]
  %v14 = vld [vmem:[%s1 + $0x2] sm:$0x1]
  %15 = vrot.lane.b32.xlu0 %v11, 127
  %v16 = vpop.permute.xlu0 %15
  %17 = vrot.lane.b32.xlu0 %v11, 1
  %v18 = vpop.permute.xlu0 %17
  %v19 = vlaneseq
  %v20 = vshrl.u32 %v19, 7
  %v21 = vsub.s32 0, %v20
  %v22 = vrot.slane %v12, %v21
  %v23 = vmul.f32 %v11, %v22
  %v24 = vlaneseq
  %v25 = vshrl.u32 %v24, 7
  %v26 = vsub.s32 0, %v25
  %v27 = vrot.slane %v13, %v26
  %v28 = vmul.f32 %v16, %v27
  %v29 = vadd.f32 %v23, %v28
  %v30 = vlaneseq
  %v31 = vshrl.u32 %v30, 7
  %v32 = vsub.s32 0, %v31
  %v33 = vrot.slane %v14, %v32
  %v34 = vmul.f32 %v18, %v33
  %v35 = vadd.f32 %v29, %v34
  %36 = vst [vmem:[%s2] sm:$0xf] %v35
  // Predicated region
  $region10: #{_rope_apply.1} parent=0 // pred_check
    _
  $region11: #{_rope_apply.1} parent=0 // pred_check_branch
    %38 = sbr.rel (0) target = $region13
  $region12: #{_rope_apply.1} parent=0 // pred_region
    _
  $region13: #{_rope_apply.1} parent=0 // pred_fallthru
    _
  // Predicated region
  $region14: #{_rope_apply.1} parent=0 // pred_check
    _
  $region15: #{_rope_apply.1} parent=0 // pred_check_branch
    %40 = sbr.rel (0) target = $region17
  $region16: #{_rope_apply.1} parent=0 // pred_region
    _
  $region17: #{_rope_apply.1} parent=0 // pred_fallthru
    _

</llo_original>
